<compile_context>
chip_gen: v6e
topology: v6e:2x2x1
jax: 0.10.0
libtpu: 0.0.40
codegen_flags: <defaults>
</compile_context>

<pallas_src>
import functools

import jax
import jax.numpy as jnp
from jax import lax
from jax.experimental import pallas as pl
from jax.experimental.pallas import tpu as pltpu

EPS = 1e-6


def _round_up(n, m):
    return ((n + m - 1) // m) * m


def _tpu_vmem_bytes():
    try:
        return pltpu.get_tpu_info().vmem_capacity_bytes
    except Exception:
        return 64 * 1024 * 1024


def _mxu_align():
    # v6e/v7x MXU native tile is 256x256 (bf16); v5e and older are 128x128.
    try:
        kind = jax.devices()[0].device_kind.lower()
    except Exception:
        kind = ""
    if ("v2" in kind) or ("v3" in kind) or ("v4" in kind) or ("v5" in kind):
        return 128
    return 256


def _default_tiles():
    # 128-MiB-VMEM parts (v5e/v6e): big row tile + big D_ff tile.
    # 64-MiB-per-TC parts (v7x): smaller tiles so double-buffered weight
    # chunks + the (tm, tf) intermediate fit the ~48 MiB cap.
    if _tpu_vmem_bytes() >= 100 * 1024 * 1024:
        return 512, 2048
    return 256, 1024


def _pad_dim(d, align):
    p = _round_up(d, 128)
    if align > 128 and d > 128 and p % align != 0:
        p = _round_up(d, align)  # avoid a half-filled MXU edge pass on v6e/v7x
    return p


def _sublayer_kernel(x_ref, w1_ref, b1_ref, w2_ref, c2_ref, o_ref,
                     normed_ref, acc_ref, *, d_valid):
    """Grid point (i, f): row tile i, D_ff chunk f of the FFN."""
    f = pl.program_id(1)

    @pl.when(f == 0)
    def _():
        # LayerNorm (PyTorch semantics: unbiased std, eps added to the std).
        # a_2 is folded into w1 and b_2 into b1 on the host, so only the
        # centered/normalized activations are materialized here.
        x = x_ref[...].astype(jnp.float32)
        d_pad = x.shape[-1]
        mean = jnp.sum(x, axis=-1, keepdims=True) * (1.0 / d_valid)
        xc = x - mean
        if d_pad != d_valid:
            lane = lax.broadcasted_iota(jnp.int32, (1, d_pad), 1)
            xc = jnp.where(lane < d_valid, xc, 0.0)
        var = jnp.sum(xc * xc, axis=-1, keepdims=True) * (1.0 / max(d_valid - 1, 1))
        inv = pl.reciprocal(jnp.sqrt(var) + EPS, approx=False)
        normed_ref[...] = (xc * inv).astype(jnp.bfloat16)
        acc_ref[...] = x                      # residual seeds the accumulator

    # One D_ff chunk of the position-wise FFN (bf16 MXU operands, f32 acc).
    # TODO(synk): dropout layers are identity in eval mode; no RNG masking.
    h = jnp.dot(normed_ref[...], w1_ref[...],
                preferred_element_type=jnp.float32) + b1_ref[...]
    h = jnp.maximum(h, 0.0).astype(jnp.bfloat16)
    acc_ref[...] += jnp.dot(h, w2_ref[...], preferred_element_type=jnp.float32)

    @pl.when(f == pl.num_programs(1) - 1)
    def _():
        o_ref[...] = (acc_ref[...] + c2_ref[...]).astype(o_ref.dtype)


def prepare_sublayer_params(a2, b2, w1, b1, w2, c2, *, tf=None, mxu_align=None):
    """One-time weight preprocessing (fold + cast + pad).  Reuse across calls."""
    D, D_ff = w1.shape
    f32 = jnp.float32
    if mxu_align is None:
        mxu_align = _mxu_align()
    if tf is None:
        tf = _default_tiles()[1]

    Dp = _pad_dim(D, mxu_align)
    Fp0 = _pad_dim(D_ff, mxu_align)
    tf_cap = _round_up(min(tf, Fp0), 128)
    nf = pl.cdiv(Fp0, tf_cap)
    tf_eff = _round_up(pl.cdiv(Fp0, nf), 128)
    Fp = nf * tf_eff

    # Fold LayerNorm gain into w1 and LayerNorm shift into the first FFN bias.
    w1_eff = (a2.astype(f32)[:, None] * w1.astype(f32)).astype(jnp.bfloat16)
    b1_eff = b1.reshape(1, D_ff).astype(f32) + b2.reshape(1, D).astype(f32) @ w1.astype(f32)

    return dict(
        w1=jnp.pad(w1_eff, ((0, Dp - D), (0, Fp - D_ff))),
        b1=jnp.pad(b1_eff, ((0, 0), (0, Fp - D_ff))),
        w2=jnp.pad(w2.astype(jnp.bfloat16), ((0, Fp - D_ff), (0, Dp - D))),
        c2=jnp.pad(c2.reshape(1, D).astype(f32), ((0, 0), (0, Dp - D))),
        D=D, D_ff=D_ff, Dp=Dp, Fp=Fp, tf=tf_eff,
    )


def sublayer_connection_apply(x, params, *, tm=None, out_dtype=None):
    """x: (B, S, D) -> (B, S, D).  `params` from prepare_sublayer_params."""
    B, S, D = x.shape
    assert D == params["D"], "feature dim mismatch with prepared params"
    Dp, Fp, tf = params["Dp"], params["Fp"], params["tf"]
    if tm is None:
        tm = _default_tiles()[0]
    if out_dtype is None:
        out_dtype = x.dtype

    M = B * S
    tm_eff = max(8, min(_round_up(tm, 8), _round_up(M, 8)))
    n_rows = pl.cdiv(M, tm_eff)          # ragged last row tile: Pallas masks it
    nf = Fp // tf

    xf = x.reshape(M, D)
    if Dp != D:
        xf = jnp.pad(xf, ((0, 0), (0, Dp - D)))   # lane padding only when needed

    flops = 4 * M * Dp * Fp
    bytes_accessed = (
        xf.size * xf.dtype.itemsize
        + M * Dp * jnp.dtype(out_dtype).itemsize
        + params["w1"].size * 2 + params["w2"].size * 2
        + params["b1"].size * 4 + params["c2"].size * 4
    )

    out = pl.pallas_call(
        functools.partial(_sublayer_kernel, d_valid=D),
        out_shape=jax.ShapeDtypeStruct((M, Dp), out_dtype),
        grid_spec=pltpu.PrefetchScalarGridSpec(
            num_scalar_prefetch=0,
            grid=(n_rows, nf),
            in_specs=[
                pl.BlockSpec((tm_eff, Dp), lambda i, f: (i, 0)),  # x rows (resident across f)
                pl.BlockSpec((Dp, tf), lambda i, f: (0, f)),      # w1 chunk (bf16, a2-folded)
                pl.BlockSpec((1, tf), lambda i, f: (0, f)),       # b1_eff chunk (f32)
                pl.BlockSpec((tf, Dp), lambda i, f: (f, 0)),      # w2 chunk (bf16)
                pl.BlockSpec((1, Dp), lambda i, f: (0, 0)),       # c2 (grid-invariant)
            ],
            out_specs=pl.BlockSpec((tm_eff, Dp), lambda i, f: (i, 0)),
            scratch_shapes=[
                pltpu.VMEM((tm_eff, Dp), jnp.bfloat16),   # normed activations
                pltpu.VMEM((tm_eff, Dp), jnp.float32),    # residual + FFN accumulator
            ],
        ),
        compiler_params=pltpu.CompilerParams(
            dimension_semantics=("parallel", "arbitrary"),
            vmem_limit_bytes=max(32 * 1024 * 1024, (_tpu_vmem_bytes() * 3) // 4),
        ),
        cost_estimate=pl.CostEstimate(
            flops=int(flops), transcendentals=0, bytes_accessed=int(bytes_accessed)),
    )(xf, params["w1"], params["b1"], params["w2"], params["c2"])

    if Dp != D:
        out = out[:, :D]
    return out.reshape(B, S, D)


def sublayer_connection(x, a2, b2, w1, b1, w2, c2, *, tm=None, tf=None, out_dtype=None):
    """One-shot convenience wrapper.  For repeated use (training/serving loop)
    call prepare_sublayer_params once and reuse it with sublayer_connection_apply
    so weights are not re-cast/padded/folded every step."""
    params = prepare_sublayer_params(a2, b2, w1, b1, w2, c2, tf=tf)
    return sublayer_connection_apply(x, params, tm=tm, out_dtype=out_dtype)


def _reference_f32(x, a2, b2, w1, b1, w2, c2):
    """Exact PyTorch-semantics reference (all f32)."""
    xf = x.astype(jnp.float32)
    d = xf.shape[-1]
    mean = jnp.mean(xf, axis=-1, keepdims=True)
    xc = xf - mean
    std = jnp.sqrt(jnp.sum(xc * xc, axis=-1, keepdims=True) / max(d - 1, 1))
    normed = a2 * xc / (std + EPS) + b2
    h = jnp.maximum(normed @ w1 + b1, 0.0)
    return xf + h @ w2 + c2


def _reference_bf16(x, a2, b2, w1, b1, w2, c2):
    """Mirrors the kernel arithmetic (bf16 MXU operands, f32 acc, a2/b2 folds)."""
    xf = x.astype(jnp.float32)
    d = xf.shape[-1]
    mean = jnp.mean(xf, axis=-1, keepdims=True)
    xc = xf - mean
    std = jnp.sqrt(jnp.sum(xc * xc, axis=-1, keepdims=True) / max(d - 1, 1))
    normed = (xc / (std + EPS)).astype(jnp.bfloat16)
    w1_eff = (a2[:, None] * w1).astype(jnp.bfloat16)
    b1_eff = b1 + b2 @ w1
    h = jnp.dot(normed, w1_eff, preferred_element_type=jnp.float32) + b1_eff
    h = jnp.maximum(h, 0.0).astype(jnp.bfloat16)
    y = jnp.dot(h, w2.astype(jnp.bfloat16), preferred_element_type=jnp.float32) + c2
    return xf + y


if __name__ == "__main__":
    key = jax.random.PRNGKey(0)

    # ---- Config 1: SublayerConnection(size=32) -> FFN(d_model=32, d_ff=32).
    B, S, D = 2, 8, 32
    D_ff = D
    kx, ka, kb, kw1, kb1, kw2, kc2 = jax.random.split(key, 7)
    x = jax.random.normal(kx, (B, S, D), dtype=jnp.float32)
    a2 = 1.0 + 0.1 * jax.random.normal(ka, (D,), jnp.float32)     # exercise a2 fold
    b2 = 0.05 * jax.random.normal(kb, (D,), jnp.float32)          # exercise b2 fold
    w1 = jax.random.normal(kw1, (D, D_ff), jnp.float32) * 0.1
    b1 = jax.random.normal(kb1, (D_ff,), jnp.float32) * 0.01
    w2 = jax.random.normal(kw2, (D_ff, D), jnp.float32) * 0.1
    c2 = jax.random.normal(kc2, (D,), jnp.float32) * 0.01

    params = prepare_sublayer_params(a2, b2, w1, b1, w2, c2)      # hoisted weight prep
    out = jax.block_until_ready(sublayer_connection_apply(x, params))
    assert out.shape == (B, S, D)
    assert jnp.allclose(out, _reference_bf16(x, a2, b2, w1, b1, w2, c2),
                        atol=2e-3, rtol=2e-3), "cfg1 mismatch vs bf16-mirrored reference"
    assert jnp.allclose(out, _reference_f32(x, a2, b2, w1, b1, w2, c2),
                        atol=2e-2, rtol=2e-2), "cfg1 mismatch vs f32 reference"

    # ---- Config 2: exercises multiple D_ff tiles, lane padding and a ragged
    # last row tile (M=15 with tm=8).
    B2, S2, D2, F2 = 3, 5, 160, 384
    k2 = jax.random.split(jax.random.PRNGKey(1), 7)
    x2 = jax.random.normal(k2[0], (B2, S2, D2), dtype=jnp.float32)
    a2b = 1.0 + 0.1 * jax.random.normal(k2[1], (D2,), jnp.float32)
    b2b = 0.05 * jax.random.normal(k2[2], (D2,), jnp.float32)
    w1b = jax.random.normal(k2[3], (D2, F2), jnp.float32) * 0.1
    b1b = jax.random.normal(k2[4], (F2,), jnp.float32) * 0.01
    w2b = jax.random.normal(k2[5], (F2, D2), jnp.float32) * 0.1
    c2b = jax.random.normal(k2[6], (D2,), jnp.float32) * 0.01

    params2 = prepare_sublayer_params(a2b, b2b, w1b, b1b, w2b, c2b, tf=128)
    out2 = jax.block_until_ready(sublayer_connection_apply(x2, params2, tm=8))
    assert out2.shape == (B2, S2, D2)
    assert jnp.allclose(out2, _reference_bf16(x2, a2b, b2b, w1b, b1b, w2b, c2b),
                        atol=3e-3, rtol=3e-3), "cfg2 mismatch vs bf16-mirrored reference"
    assert jnp.allclose(out2, _reference_f32(x2, a2b, b2b, w1b, b1b, w2b, c2b),
                        atol=5e-2, rtol=5e-2), "cfg2 mismatch vs f32 reference"

    print("KERNEL_OK")
</pallas_src>

<mosaic_0001>
module attributes {stable_mosaic.version = 11 : i64} {
  func.func @_sublayer_kernel(%arg0: i32, %arg1: i32, %arg2: memref<16x128xf32, #tpu.memory_space<vmem>>, %arg3: memref<128x128xbf16, #tpu.memory_space<vmem>>, %arg4: memref<1x128xf32, #tpu.memory_space<vmem>>, %arg5: memref<128x128xbf16, #tpu.memory_space<vmem>>, %arg6: memref<1x128xf32, #tpu.memory_space<vmem>>, %arg7: memref<16x128xf32, #tpu.memory_space<vmem>>, %arg8: memref<16x128xbf16, #tpu.memory_space<vmem>>, %arg9: memref<16x128xf32, #tpu.memory_space<vmem>>) attributes {dimension_semantics = [#tpu.dimension_semantics<parallel>, #tpu.dimension_semantics<arbitrary>], iteration_bounds = array<i64: 1, 1>, scalar_prefetch = 0 : i64, scratch_operands = 2 : i64, tpu.core_type = #tpu.core_type<tc>, window_params = [{transform_indices = @transform_0, window_bounds = array<i64: 16, 128>}, {transform_indices = @transform_1, window_bounds = array<i64: 128, 128>}, {transform_indices = @transform_2, window_bounds = array<i64: 1, 128>}, {transform_indices = @transform_3, window_bounds = array<i64: 128, 128>}, {pipeline_mode = #tpu.pipeline_mode<synchronous>, transform_indices = @transform_4, window_bounds = array<i64: 1, 128>}, {transform_indices = @transform_5, window_bounds = array<i64: 16, 128>}]} {
    %c0_i32 = arith.constant 0 : i32
    %0 = arith.cmpi eq, %arg1, %c0_i32 : i32
    %1 = arith.extui %0 : i1 to i32
    %c0_i32_0 = arith.constant 0 : i32
    %2 = arith.cmpi ne, %1, %c0_i32_0 : i32
    scf.if %2 {
      %c0_16 = arith.constant 0 : index
      %c0_17 = arith.constant 0 : index
      %20 = vector.load %arg2[%c0_16, %c0_17] : memref<16x128xf32, #tpu.memory_space<vmem>>, vector<16x128xf32>
      %cst_18 = arith.constant dense<0.000000e+00> : vector<16xf32>
      %21 = vector.multi_reduction <add>, %20, %cst_18 [1] : vector<16x128xf32> to vector<16xf32>
      %22 = vector.shape_cast %21 : vector<16xf32> to vector<16x1xf32>
      %cst_19 = arith.constant 3.125000e-02 : f32
      %23 = vector.broadcast %cst_19 : f32 to vector<16x1xf32>
      %24 = arith.mulf %22, %23 : vector<16x1xf32>
      %25 = vector.broadcast %24 : vector<16x1xf32> to vector<16x128xf32>
      %26 = arith.subf %20, %25 : vector<16x128xf32>
      %27 = tpu.iota {dimensions = array<i32: 1>} : vector<1x128xi32>
      %c32_i32 = arith.constant 32 : i32
      %28 = vector.broadcast %c32_i32 : i32 to vector<1x128xi32>
      %29 = arith.cmpi slt, %27, %28 : vector<1x128xi32>
      %cst_20 = arith.constant 0.000000e+00 : f32
      %30 = vector.shape_cast %29 : vector<1x128xi1> to vector<1x128xi1>
      %31 = vector.broadcast %30 : vector<1x128xi1> to vector<16x128xi1>
      %32 = vector.broadcast %cst_20 : f32 to vector<16x128xf32>
      %33 = arith.select %31, %26, %32 : vector<16x128xi1>, vector<16x128xf32>
      %34 = arith.mulf %33, %33 : vector<16x128xf32>
      %cst_21 = arith.constant dense<0.000000e+00> : vector<16xf32>
      %35 = vector.multi_reduction <add>, %34, %cst_21 [1] : vector<16x128xf32> to vector<16xf32>
      %36 = vector.shape_cast %35 : vector<16xf32> to vector<16x1xf32>
      %cst_22 = arith.constant 0.0322580636 : f32
      %37 = vector.broadcast %cst_22 : f32 to vector<16x1xf32>
      %38 = arith.mulf %36, %37 : vector<16x1xf32>
      %39 = math.sqrt %38 : vector<16x1xf32>
      %cst_23 = arith.constant 9.99999997E-7 : f32
      %40 = vector.broadcast %cst_23 : f32 to vector<16x1xf32>
      %41 = arith.addf %39, %40 : vector<16x1xf32>
      %42 = tpu.reciprocal %41 : vector<16x1xf32> -> vector<16x1xf32>
      %43 = vector.broadcast %42 : vector<16x1xf32> to vector<16x128xf32>
      %44 = arith.mulf %33, %43 : vector<16x128xf32>
      %45 = arith.truncf %44 : vector<16x128xf32> to vector<16x128xbf16>
      %c0_24 = arith.constant 0 : index
      %c0_25 = arith.constant 0 : index
      %46 = vector.load %arg8[%c0_24, %c0_25] : memref<16x128xbf16, #tpu.memory_space<vmem>>, vector<16x128xbf16>
      tpu.vector_store %arg8[%c0_24, %c0_25], %45 {strides = array<i32>} : memref<16x128xbf16, #tpu.memory_space<vmem>>, vector<16x128xbf16>,
      %c0_26 = arith.constant 0 : index
      %c0_27 = arith.constant 0 : index
      %47 = vector.load %arg9[%c0_26, %c0_27] : memref<16x128xf32, #tpu.memory_space<vmem>>, vector<16x128xf32>
      tpu.vector_store %arg9[%c0_26, %c0_27], %20 {strides = array<i32>} : memref<16x128xf32, #tpu.memory_space<vmem>>, vector<16x128xf32>,
    } else {
    }
    %c0 = arith.constant 0 : index
    %c0_1 = arith.constant 0 : index
    %3 = vector.load %arg8[%c0, %c0_1] : memref<16x128xbf16, #tpu.memory_space<vmem>>, vector<16x128xbf16>
    %c0_2 = arith.constant 0 : index
    %c0_3 = arith.constant 0 : index
    %4 = vector.load %arg3[%c0_2, %c0_3] : memref<128x128xbf16, #tpu.memory_space<vmem>>, vector<128x128xbf16>
    %cst = arith.constant dense<0.000000e+00> : vector<16x128xf32>
    %5 = tpu.matmul %3, %4, %cst {dimension_numbers = #tpu.dot_dimension_numbers<[1], [0], [0], [1], [0, 0, 1, 1], [], []>} : vector<16x128xbf16>, vector<128x128xbf16>, vector<16x128xf32> -> vector<16x128xf32>
    %c0_4 = arith.constant 0 : index
    %c0_5 = arith.constant 0 : index
    %6 = vector.load %arg4[%c0_4, %c0_5] : memref<1x128xf32, #tpu.memory_space<vmem>>, vector<1x128xf32>
    %7 = vector.broadcast %6 : vector<1x128xf32> to vector<16x128xf32>
    %8 = arith.addf %5, %7 : vector<16x128xf32>
    %cst_6 = arith.constant 0.000000e+00 : f32
    %9 = vector.broadcast %cst_6 : f32 to vector<16x128xf32>
    %10 = arith.maximumf %8, %9 : vector<16x128xf32>
    %11 = arith.truncf %10 : vector<16x128xf32> to vector<16x128xbf16>
    %c0_7 = arith.constant 0 : index
    %c0_8 = arith.constant 0 : index
    %12 = vector.load %arg9[%c0_7, %c0_8] : memref<16x128xf32, #tpu.memory_space<vmem>>, vector<16x128xf32>
    %c0_9 = arith.constant 0 : index
    %c0_10 = arith.constant 0 : index
    %13 = vector.load %arg5[%c0_9, %c0_10] : memref<128x128xbf16, #tpu.memory_space<vmem>>, vector<128x128xbf16>
    %cst_11 = arith.constant dense<0.000000e+00> : vector<16x128xf32>
    %14 = tpu.matmul %11, %13, %cst_11 {dimension_numbers = #tpu.dot_dimension_numbers<[1], [0], [0], [1], [0, 0, 1, 1], [], []>} : vector<16x128xbf16>, vector<128x128xbf16>, vector<16x128xf32> -> vector<16x128xf32>
    %15 = arith.addf %12, %14 : vector<16x128xf32>
    %c0_12 = arith.constant 0 : index
    %c0_13 = arith.constant 0 : index
    %16 = vector.load %arg9[%c0_12, %c0_13] : memref<16x128xf32, #tpu.memory_space<vmem>>, vector<16x128xf32>
    tpu.vector_store %arg9[%c0_12, %c0_13], %15 {strides = array<i32>} : memref<16x128xf32, #tpu.memory_space<vmem>>, vector<16x128xf32>,
    %c0_i32_14 = arith.constant 0 : i32
    %17 = arith.cmpi eq, %arg1, %c0_i32_14 : i32
    %18 = arith.extui %17 : i1 to i32
    %c0_i32_15 = arith.constant 0 : i32
    %19 = arith.cmpi ne, %18, %c0_i32_15 : i32
    scf.if %19 {
      %c0_16 = arith.constant 0 : index
      %c0_17 = arith.constant 0 : index
      %20 = vector.load %arg9[%c0_16, %c0_17] : memref<16x128xf32, #tpu.memory_space<vmem>>, vector<16x128xf32>
      %c0_18 = arith.constant 0 : index
      %c0_19 = arith.constant 0 : index
      %21 = vector.load %arg6[%c0_18, %c0_19] : memref<1x128xf32, #tpu.memory_space<vmem>>, vector<1x128xf32>
      %22 = vector.broadcast %21 : vector<1x128xf32> to vector<16x128xf32>
      %23 = arith.addf %20, %22 : vector<16x128xf32>
      %c0_20 = arith.constant 0 : index
      %c0_21 = arith.constant 0 : index
      %24 = vector.load %arg7[%c0_20, %c0_21] : memref<16x128xf32, #tpu.memory_space<vmem>>, vector<16x128xf32>
      tpu.vector_store %arg7[%c0_20, %c0_21], %23 {strides = array<i32>} : memref<16x128xf32, #tpu.memory_space<vmem>>, vector<16x128xf32>,
    } else {
    }
    return
  }
  func.func @transform_0(%arg0: i32, %arg1: i32) -> (i32, i32) {
    %c0_i32 = arith.constant 0 : i32
    %c0_i32_0 = arith.constant 0 : i32
    return %arg0, %c0_i32 : i32, i32
  }
  func.func @transform_1(%arg0: i32, %arg1: i32) -> (i32, i32) {
    %c0_i32 = arith.constant 0 : i32
    %c0_i32_0 = arith.constant 0 : i32
    return %c0_i32, %arg1 : i32, i32
  }
  func.func @transform_2(%arg0: i32, %arg1: i32) -> (i32, i32) {
    %c0_i32 = arith.constant 0 : i32
    %c0_i32_0 = arith.constant 0 : i32
    return %c0_i32, %arg1 : i32, i32
  }
  func.func @transform_3(%arg0: i32, %arg1: i32) -> (i32, i32) {
    %c0_i32 = arith.constant 0 : i32
    %c0_i32_0 = arith.constant 0 : i32
    return %arg1, %c0_i32 : i32, i32
  }
  func.func @transform_4(%arg0: i32, %arg1: i32) -> (i32, i32) {
    %c0_i32 = arith.constant 0 : i32
    %c0_i32_0 = arith.constant 0 : i32
    %c0_i32_1 = arith.constant 0 : i32
    return %c0_i32, %c0_i32_0 : i32, i32
  }
  func.func @transform_5(%arg0: i32, %arg1: i32) -> (i32, i32) {
    %c0_i32 = arith.constant 0 : i32
    %c0_i32_0 = arith.constant 0 : i32
    return %arg0, %c0_i32 : i32, i32
  }
}

</mosaic_0001>

<llo_original>
// kernel: tpu_custom_call.1
$region0: #{tpu_custom_call.1}
  #allocation0 [shape = 'u32[]', space=smem, size = 0x4, offset = 0x4, fixed_abs, tag = 'smem constant byte address 0x4 - core index']
  #allocation1 [shape = 'u32[144,128]{1,0:T(1,128)}', space=vmem, size = 0x12000, scoped, tag = 'internal scratch']
  #allocation2 [shape = 'bf16[16,128]{1,0:T(8,128)(2,1)}', space=vmem, size = 0x1000, scoped, tag = 'scratch operand']
  #allocation3 [shape = 'f32[16,128]{1,0:T(8,128)}', space=vmem, size = 0x2000, scoped, tag = 'scratch operand']
  %s0 = inlined_call_operand.hbm [shape: f32[16,128], index: 0, kind: input, shape index: {}]
  %s1 = inlined_call_operand.hbm [shape: bf16[128,128], index: 1, kind: input, shape index: {}]
  %s2 = inlined_call_operand.vmem [shape: f32[1,128], index: 2, kind: input, shape index: {}]
  %s3 = inlined_call_operand.hbm [shape: bf16[128,128], index: 3, kind: input, shape index: {}]
  %s4 = inlined_call_operand.vmem [shape: f32[1,128], index: 4, kind: input, shape index: {}]
  %s5 = inlined_call_operand.hbm [shape: f32[16,128], index: 5, kind: output, shape index: {}]
  %s6 = sld [smem:[#allocation0]]
  $region50: #{tpu_custom_call.1} parent=0
    _
  %s8 = ssub.s32 1, %s6
  %s9 = scalar_select 0, %s8, %s6
  $region1: #{tpu_custom_call.1} parent=0
    #allocation4 [shape = 'u8[8192]{0}', space=vmem, size = 0x2000, scoped, tag = 'input window, operand 0, single buffered']
    #allocation5 [shape = 's32[1]{0}', space=sflag, size = 0x4, scoped, tag = 'scoped memory for tpu_custom_call.1']
    #allocation6 [shape = 's32[1]{0}', space=sflag, size = 0x4, scoped, tag = 'scoped memory for tpu_custom_call.1']
    #allocation7 [shape = 'u8[32768]{0}', space=vmem, size = 0x8000, scoped, tag = 'input window, operand 1, single buffered']
    #allocation8 [shape = 's32[1]{0}', space=sflag, size = 0x4, scoped, tag = 'scoped memory for tpu_custom_call.1']
    #allocation9 [shape = 'u8[32768]{0}', space=vmem, size = 0x8000, scoped, tag = 'input window, operand 3, single buffered']
    #allocation10 [shape = 'u8[8192]{0}', space=vmem, size = 0x2000, scoped, tag = 'output window, operand 0, single buffered']
    %10 = vsyncpa [#allocation5], 0
    %11 = vsyncpa [#allocation8], 0
    %12 = vsyncpa [#allocation6], 0
    // Predicated region
    $region2: #{tpu_custom_call.1} parent=1 // pred_check
      _
    $region3: #{tpu_custom_call.1} parent=1 // pred_check_branch
      %14 = sbr.rel (0) target = $region5
    $region4: #{tpu_custom_call.1} parent=1 // pred_region
      %s16 = ssub.s32 256, 256
      %17 = vsyncadd [#allocation5], %s16
      %s18 = sshll.u32 [#allocation4], 4
      %s19 = int_to_ptr.vmem [resolvable:$true] %s18
      %24 = dma.hbm_to_vmem [thread:$0]  %s0, 256, %s19, [#allocation5], 128, 128, 8
    $region5: #{tpu_custom_call.1} parent=1 // pred_fallthru
      _
    // Predicated region
    $region6: #{tpu_custom_call.1} parent=1 // pred_check
      _
    $region7: #{tpu_custom_call.1} parent=1 // pred_check_branch
      %26 = sbr.rel (0) target = $region9
    $region8: #{tpu_custom_call.1} parent=1 // pred_region
      %s28 = ssub.s32 1024, 1024
      %29 = vsyncadd [#allocation8], %s28
      %s30 = sshll.u32 [#allocation7], 4
      %s31 = int_to_ptr.vmem [resolvable:$true] %s30
      %36 = dma.hbm_to_vmem [thread:$0]  %s1, 1024, %s31, [#allocation8], 64, 64, 4
    $region9: #{tpu_custom_call.1} parent=1 // pred_fallthru
      _
    // Predicated region
    $region10: #{tpu_custom_call.1} parent=1 // pred_check
      _
    $region11: #{tpu_custom_call.1} parent=1 // pred_check_branch
      %38 = sbr.rel (0) target = $region13
    $region12: #{tpu_custom_call.1} parent=1 // pred_region
      _
    $region13: #{tpu_custom_call.1} parent=1 // pred_fallthru
      _
    // Predicated region
    $region14: #{tpu_custom_call.1} parent=1 // pred_check
      _
    $region15: #{tpu_custom_call.1} parent=1 // pred_check_branch
      %40 = sbr.rel (0) target = $region17
    $region16: #{tpu_custom_call.1} parent=1 // pred_region
      %s42 = ssub.s32 1024, 1024
      %43 = vsyncadd [#allocation8], %s42
      %s44 = sshll.u32 [#allocation9], 4
      %s45 = int_to_ptr.vmem [resolvable:$true] %s44
      %50 = dma.hbm_to_vmem [thread:$0]  %s3, 1024, %s45, [#allocation8], 64, 64, 4
    $region17: #{tpu_custom_call.1} parent=1 // pred_fallthru
      _
    // Predicated region
    $region18: #{tpu_custom_call.1} parent=1 // pred_check
      _
    $region19: #{tpu_custom_call.1} parent=1 // pred_check_branch
      %52 = sbr.rel (0) target = $region21
    $region20: #{tpu_custom_call.1} parent=1 // pred_region
      _
    $region21: #{tpu_custom_call.1} parent=1 // pred_fallthru
      _
    // Predicated region
    $region22: #{tpu_custom_call.1} parent=1 // pred_check
      _
    $region23: #{tpu_custom_call.1} parent=1 // pred_check_branch
      %54 = sbr.rel (0) target = $region25
    $region24: #{tpu_custom_call.1} parent=1 // pred_region
      %55 = dma.done [#allocation5], 256
    $region25: #{tpu_custom_call.1} parent=1 // pred_fallthru
      _
    // Predicated region
    $region26: #{tpu_custom_call.1} parent=1 // pred_check
      _
    $region27: #{tpu_custom_call.1} parent=1 // pred_check_branch
      %57 = sbr.rel (0) target = $region29
    $region28: #{tpu_custom_call.1} parent=1 // pred_region
      %58 = dma.done [#allocation8], 1024
    $region29: #{tpu_custom_call.1} parent=1 // pred_fallthru
      _
    // Predicated region
    $region30: #{tpu_custom_call.1} parent=1 // pred_check
      _
    $region31: #{tpu_custom_call.1} parent=1 // pred_check_branch
      %60 = sbr.rel (0) target = $region33
    $region32: #{tpu_custom_call.1} parent=1 // pred_region
      %61 = dma.done [#allocation8], 1024
    $region33: #{tpu_custom_call.1} parent=1 // pred_fallthru
      _
    %p63 = scmp.eq.s32.totalorder 0, 0
    // Predicated region
    $region34: #{tpu_custom_call.1} parent=1 // pred_check
      %p64 = pneg %p63
    $region35: #{tpu_custom_call.1} parent=1 // pred_check_branch
      %66 = sbr.rel (%p64) target = $region37
    $region36: #{tpu_custom_call.1} parent=1 // pred_region
      %v67 = vld [vmem:[#allocation4] sm:$0xff]
      %v68 = vld [vmem:[#allocation4 + $0x8] sm:$0xff]
      %69 = vadd.xlane.f32.xlu0 %v67
      %v70 = vpop.xlane.xlu0 %69
      %71 = vadd.xlane.f32.xlu0 %v68
      %v72 = vpop.xlane.xlu0 %71
      %v73 = vmul.f32 %v70, 0.03125
      %v74 = vmul.f32 %v72, 0.03125
      %v75 = vsub.f32 %v67, %v73
      %v76 = vsub.f32 %v68, %v74
      %v77 = vlaneseq
      %v78 = vand.u32 %v77, 127
      %vm79 = vcmp.lt.s32.totalorder %v78, 32
      %v80 = vsel %vm79, 1, 0
      %vm81 = vcmp.eq.s32.totalorder %v80, 1
      %v82 = vsel %vm81, %v75, 0.0
      %v83 = vsel %vm81, %v76, 0.0
      %v84 = vmul.f32 %v82, %v82
      %v85 = vmul.f32 %v83, %v83
      %86 = vadd.xlane.f32.xlu0 %v84
      %v87 = vpop.xlane.xlu0 %86
      %88 = vadd.xlane.f32.xlu0 %v85
      %v89 = vpop.xlane.xlu0 %88
      %v90 = vmul.f32 %v87, 0.032258064
      %v91 = vmul.f32 %v89, 0.032258064
      %v92 = vrsqrt.pop %v90
      %v93 = vmul.f32 %v90, %v92
      %vm94 = vcmp.eq.f32.partialorder %v90, inf
      %v95 = vsel %vm94, %v90, %v93
      %vm96 = vcmp.eq.f32.partialorder %v90, 0.0
      %v97 = vand.u32 %v90, 2147483648
      %v98 = vsel %vm96, %v97, %v95
      %v99 = vrsqrt.pop %v91
      %v100 = vmul.f32 %v91, %v99
      %vm101 = vcmp.eq.f32.partialorder %v91, inf
      %v102 = vsel %vm101, %v91, %v100
      %vm103 = vcmp.eq.f32.partialorder %v91, 0.0
      %v104 = vand.u32 %v91, 2147483648
      %v105 = vsel %vm103, %v104, %v102
      %v106 = vadd.f32 %v98, 1e-06
      %v107 = vadd.f32 %v105, 1e-06
      %v108 = vrcp.pop %v106
      %v109 = vrcp.pop %v107
      %v110 = vmul.f32 %v82, %v108
      %v111 = vmul.f32 %v83, %v109
      %v112 = vpack.c.bf16 %v111, %v110
      %v114 = vunpack.c.l.b16 %v112
      %v115 = vunpack.c.h.b16 %v112
      %v116 = vpack.c.b16 %v114, %v114
      %v117 = vpack.c.b16 %v115, %v115
      %120 = vst [vmem:[#allocation2] sm:$0xf] %v116
      %121 = vst [vmem:[#allocation2 + $0x4] sm:$0xf] %v117
      %122 = vst [vmem:[#allocation3] sm:$0xff] %v67
      %123 = vst [vmem:[#allocation3 + $0x8] sm:$0xff] %v68
    $region37: #{tpu_custom_call.1} parent=1 // pred_fallthru
      _
    %v124 = vld [vmem:[#allocation2] sm:$0xf]
    %v125 = vld [vmem:[#allocation2 + $0x4] sm:$0xf]
    %v126 = vld [vmem:[#allocation7] sm:$0xf]
    %v127 = vld [vmem:[#allocation7 + $0x4] sm:$0xf]
    %v128 = vld [vmem:[#allocation7 + $0x8] sm:$0xf]
    %v129 = vld [vmem:[#allocation7 + $0xc] sm:$0xf]
    %v130 = vld [vmem:[#allocation7 + $0x10] sm:$0xf]
    %v131 = vld [vmem:[#allocation7 + $0x14] sm:$0xf]
    %v132 = vld [vmem:[#allocation7 + $0x18] sm:$0xf]
    %v133 = vld [vmem:[#allocation7 + $0x1c] sm:$0xf]
    %v134 = vld [vmem:[#allocation7 + $0x20] sm:$0xf]
    %v135 = vld [vmem:[#allocation7 + $0x24] sm:$0xf]
    %v136 = vld [vmem:[#allocation7 + $0x28] sm:$0xf]
    %v137 = vld [vmem:[#allocation7 + $0x2c] sm:$0xf]
    %v138 = vld [vmem:[#allocation7 + $0x30] sm:$0xf]
    %v139 = vld [vmem:[#allocation7 + $0x34] sm:$0xf]
    %v140 = vld [vmem:[#allocation7 + $0x38] sm:$0xf]
    %v141 = vld [vmem:[#allocation7 + $0x3c] sm:$0xf]
    %v142 = vld [vmem:[%s2] sm:$0x1]
    %v144 = vlaneseq
    %v145 = vshrl.u32 %v144, 7
    %v146 = vsub.s32 0, %v145
    %v147 = vrot.slane %v142, %v146
    %v151 = vunpack.c.l.b16 %v124
    %v152 = vunpack.c.l.b16 %v125
    %v153 = vpack.c.b16 %v152, %v151
    %v171 = vunpack.c.l.b16 %v126
    %v172 = vunpack.c.l.b16 %v127
    %v173 = vunpack.c.l.b16 %v128
    %v174 = vunpack.c.l.b16 %v129
    %v175 = vunpack.c.l.b16 %v130
    %v176 = vunpack.c.l.b16 %v131
    %v177 = vunpack.c.l.b16 %v132
    %v178 = vunpack.c.l.b16 %v133
    %v179 = vunpack.c.l.b16 %v134
    %v180 = vunpack.c.l.b16 %v135
    %v181 = vunpack.c.l.b16 %v136
    %v182 = vunpack.c.l.b16 %v137
    %v183 = vunpack.c.l.b16 %v138
    %v184 = vunpack.c.l.b16 %v139
    %v185 = vunpack.c.l.b16 %v140
    %v186 = vunpack.c.l.b16 %v141
    %v187 = vpack.c.b16 %v172, %v171
    %v188 = vpack.c.b16 %v174, %v173
    %v189 = vpack.c.b16 %v176, %v175
    %v190 = vpack.c.b16 %v178, %v177
    %v191 = vpack.c.b16 %v180, %v179
    %v192 = vpack.c.b16 %v182, %v181
    %v193 = vpack.c.b16 %v184, %v183
    %v194 = vpack.c.b16 %v186, %v185
    %203 = vmatprep.subr.bf16.mxu0 0
    %204 = vmatpush1.bf16.msra.mxu0 %v194
    %205 = vmatprep.subr.bf16.mxu0 0
    %206 = vmatpush1.bf16.msra.mxu0 %v193
    %207 = vmatprep.subr.bf16.mxu0 0
    %208 = vmatpush1.bf16.msra.mxu0 %v192
    %209 = vmatprep.subr.bf16.mxu0 0
    %210 = vmatpush1.bf16.msra.mxu0 %v191
    %211 = vmatprep.subr.bf16.mxu0 0
    %212 = vmatpush1.bf16.msra.mxu0 %v190
    %213 = vmatprep.subr.bf16.mxu0 0
    %214 = vmatpush1.bf16.msra.mxu0 %v189
    %215 = vmatprep.subr.bf16.mxu0 0
    %216 = vmatpush1.bf16.msra.mxu0 %v188
    %217 = vmatprep.subr.bf16.mxu0 0
    %218 = vmatpush1.bf16.msra.mxu0 %v187
    %219 = vmatprep.subr.bf16.mxu0 0
    %220 = vmatpush2.bf16.msra.mxu0 0
    %221 = vmatprep.subr.bf16.mxu0 0
    %222 = vmatpush2.bf16.msra.mxu0 0
    %223 = vmatprep.subr.bf16.mxu0 0
    %224 = vmatpush2.bf16.msra.mxu0 0
    %225 = vmatprep.subr.bf16.mxu0 0
    %226 = vmatpush2.bf16.msra.mxu0 0
    %227 = vmatprep.subr.bf16.mxu0 0
    %228 = vmatpush2.bf16.msra.mxu0 0
    %229 = vmatprep.subr.bf16.mxu0 0
    %230 = vmatpush2.bf16.msra.mxu0 0
    %231 = vmatprep.subr.bf16.mxu0 0
    %232 = vmatpush2.bf16.msra.mxu0 0
    %233 = vmatprep.subr.bf16.mxu0 0
    %234 = vmatpush2.bf16.msra.mxu0 0
    %235 = vmatprep.mubr.bf16.mxu0 0
    %236 = vmatmul.mubr.bf16.gmra.mxu0 %v153
    %v237 = vpop.f32.mrf.mxu0
    %v238 = vadd.f32 %v147, %v237
    %v239 = vpop.f32.mrf.mxu0
    %v240 = vpop.f32.mrf.mxu0
    %v241 = vadd.f32 %v147, %v240
    %v242 = vpop.f32.mrf.mxu0
    %243 = vdwg.mxu0
    %v244 = vmax.f32 %v238, 0.0
    %v245 = vmax.f32 %v241, 0.0
    %v246 = vpack.c.bf16 %v245, %v244
    %v247 = vld [vmem:[#allocation3] sm:$0xff]
    %v248 = vld [vmem:[#allocation3 + $0x8] sm:$0xff]
    %v249 = vld [vmem:[#allocation9] sm:$0xf]
    %v250 = vld [vmem:[#allocation9 + $0x4] sm:$0xf]
    %v251 = vld [vmem:[#allocation9 + $0x8] sm:$0xf]
    %v252 = vld [vmem:[#allocation9 + $0xc] sm:$0xf]
    %v253 = vld [vmem:[#allocation9 + $0x10] sm:$0xf]
    %v254 = vld [vmem:[#allocation9 + $0x14] sm:$0xf]
    %v255 = vld [vmem:[#allocation9 + $0x18] sm:$0xf]
    %v256 = vld [vmem:[#allocation9 + $0x1c] sm:$0xf]
    %v257 = vld [vmem:[#allocation9 + $0x20] sm:$0xf]
    %v258 = vld [vmem:[#allocation9 + $0x24] sm:$0xf]
    %v259 = vld [vmem:[#allocation9 + $0x28] sm:$0xf]
    %v260 = vld [vmem:[#allocation9 + $0x2c] sm:$0xf]
    %v261 = vld [vmem:[#allocation9 + $0x30] sm:$0xf]
    %v262 = vld [vmem:[#allocation9 + $0x34] sm:$0xf]
    %v263 = vld [vmem:[#allocation9 + $0x38] sm:$0xf]
    %v264 = vld [vmem:[#allocation9 + $0x3c] sm:$0xf]
    %v281 = vunpack.c.l.b16 %v249
    %v282 = vunpack.c.l.b16 %v250
    %v283 = vunpack.c.l.b16 %v251
    %v284 = vunpack.c.l.b16 %v252
    %v285 = vunpack.c.l.b16 %v253
    %v286 = vunpack.c.l.b16 %v254
    %v287 = vunpack.c.l.b16 %v255
    %v288 = vunpack.c.l.b16 %v256
    %v289 = vunpack.c.l.b16 %v257
    %v290 = vunpack.c.l.b16 %v258
    %v291 = vunpack.c.l.b16 %v259
    %v292 = vunpack.c.l.b16 %v260
    %v293 = vunpack.c.l.b16 %v261
    %v294 = vunpack.c.l.b16 %v262
    %v295 = vunpack.c.l.b16 %v263
    %v296 = vunpack.c.l.b16 %v264
    %v297 = vpack.c.b16 %v282, %v281
    %v298 = vpack.c.b16 %v284, %v283
    %v299 = vpack.c.b16 %v286, %v285
    %v300 = vpack.c.b16 %v288, %v287
    %v301 = vpack.c.b16 %v290, %v289
    %v302 = vpack.c.b16 %v292, %v291
    %v303 = vpack.c.b16 %v294, %v293
    %v304 = vpack.c.b16 %v296, %v295
    %313 = vmatprep.subr.bf16.mxu0 0
    %314 = vmatpush1.bf16.msra.mxu0 %v304
    %315 = vmatprep.subr.bf16.mxu0 0
    %316 = vmatpush1.bf16.msra.mxu0 %v303
    %317 = vmatprep.subr.bf16.mxu0 0
    %318 = vmatpush1.bf16.msra.mxu0 %v302
    %319 = vmatprep.subr.bf16.mxu0 0
    %320 = vmatpush1.bf16.msra.mxu0 %v301
    %321 = vmatprep.subr.bf16.mxu0 0
    %322 = vmatpush1.bf16.msra.mxu0 %v300
    %323 = vmatprep.subr.bf16.mxu0 0
    %324 = vmatpush1.bf16.msra.mxu0 %v299
    %325 = vmatprep.subr.bf16.mxu0 0
    %326 = vmatpush1.bf16.msra.mxu0 %v298
    %327 = vmatprep.subr.bf16.mxu0 0
    %328 = vmatpush1.bf16.msra.mxu0 %v297
    %329 = vmatprep.subr.bf16.mxu0 0
    %330 = vmatpush2.bf16.msra.mxu0 0
    %331 = vmatprep.subr.bf16.mxu0 0
    %332 = vmatpush2.bf16.msra.mxu0 0
    %333 = vmatprep.subr.bf16.mxu0 0
    %334 = vmatpush2.bf16.msra.mxu0 0
    %335 = vmatprep.subr.bf16.mxu0 0
    %336 = vmatpush2.bf16.msra.mxu0 0
    %337 = vmatprep.subr.bf16.mxu0 0
    %338 = vmatpush2.bf16.msra.mxu0 0
    %339 = vmatprep.subr.bf16.mxu0 0
    %340 = vmatpush2.bf16.msra.mxu0 0
    %341 = vmatprep.subr.bf16.mxu0 0
    %342 = vmatpush2.bf16.msra.mxu0 0
    %343 = vmatprep.subr.bf16.mxu0 0
    %344 = vmatpush2.bf16.msra.mxu0 0
    %345 = vmatprep.mubr.bf16.mxu0 0
    %346 = vmatmul.mubr.bf16.gmra.mxu0 %v246
    %v347 = vpop.f32.mrf.mxu0
    %v348 = vadd.f32 0.0, %v347
    %v349 = vpop.f32.mrf.mxu0
    %v350 = vpop.f32.mrf.mxu0
    %v351 = vadd.f32 0.0, %v350
    %v352 = vpop.f32.mrf.mxu0
    %353 = vdwg.mxu0
    %v354 = vadd.f32 %v247, %v348
    %v355 = vadd.f32 %v248, %v351
    %356 = vst [vmem:[#allocation3] sm:$0xff] %v354
    %357 = vst [vmem:[#allocation3 + $0x8] sm:$0xff] %v355
    // Predicated region
    $region38: #{tpu_custom_call.1} parent=1 // pred_check
      %p358 = pneg %p63
    $region39: #{tpu_custom_call.1} parent=1 // pred_check_branch
      %360 = sbr.rel (%p358) target = $region41
    $region40: #{tpu_custom_call.1} parent=1 // pred_region
      %v361 = vld [vmem:[#allocation3] sm:$0xff]
      %v362 = vld [vmem:[#allocation3 + $0x8] sm:$0xff]
      %v363 = vld [vmem:[%s4] sm:$0x1]
      %v365 = vlaneseq
      %v366 = vshrl.u32 %v365, 7
      %v367 = vsub.s32 0, %v366
      %v368 = vrot.slane %v363, %v367
      %v370 = vadd.f32 %v361, %v368
      %v371 = vadd.f32 %v362, %v368
      %372 = vst [vmem:[#allocation10] sm:$0xff] %v370
      %373 = vst [vmem:[#allocation10 + $0x8] sm:$0xff] %v371
    $region41: #{tpu_custom_call.1} parent=1 // pred_fallthru
      _
    // Predicated region
    $region42: #{tpu_custom_call.1} parent=1 // pred_check
      _
    $region43: #{tpu_custom_call.1} parent=1 // pred_check_branch
      %375 = sbr.rel (0) target = $region45
    $region44: #{tpu_custom_call.1} parent=1 // pred_region
      %s377 = ssub.s32 256, 256
      %378 = vsyncadd [#allocation6], %s377
      %s379 = sshll.u32 [#allocation10], 4
      %s380 = int_to_ptr.vmem [resolvable:$true] %s379
      %385 = dma.vmem_to_hbm [thread:$0]  %s380, 256, %s5, [#allocation6], 128, 128, 8
    $region45: #{tpu_custom_call.1} parent=1 // pred_fallthru
      _
    // Predicated region
    $region46: #{tpu_custom_call.1} parent=1 // pred_check
      _
    $region47: #{tpu_custom_call.1} parent=1 // pred_check_branch
      %387 = sbr.rel (0) target = $region49
    $region48: #{tpu_custom_call.1} parent=1 // pred_region
      %388 = dma.done [#allocation6], 256
    $region49: #{tpu_custom_call.1} parent=1 // pred_fallthru
      _
    %389 = vsyncpa [#allocation5], 1
    %390 = vsyncpa [#allocation8], 1
    %391 = vsyncpa [#allocation6], 1

</llo_original>
